<compile_context>
chip_gen: v7x
topology: tpu7x:2x2x1
jax: 0.10.0
libtpu: 0.0.40
codegen_flags: <defaults>
</compile_context>

<pallas_src>
import math
import numpy as np

import jax
import jax.numpy as jnp
from jax import lax
from jax.experimental import pallas as pl
from jax.experimental.pallas import tpu as pltpu  # noqa: F401  (TPU backend)

CFG = dict(n_actor=32, n_map=32, n_hidden=32, num_preds=8, num_mods=1,
           sample_mode="pred", obs_len=8, c_in=4, num_cands=60, num_cands_pad=64,
           pe_len=40)

MM_DT = jnp.bfloat16   # MXU operand dtype (accumulation stays f32 everywhere)


# ----------------------------------------------------------------------------- #
# Pallas kernels
# ----------------------------------------------------------------------------- #
def _full_spec(shape):
    # Whole array as a single block (block_shape == full array dims).
    return pl.BlockSpec(shape, lambda i, _n=len(shape): (0,) * _n)


def _mm(a, b):
    """MXU matmul: bf16 operands, f32 accumulate (elementwise math stays f32)."""
    return jnp.dot(a.astype(MM_DT), b.astype(MM_DT),
                   preferred_element_type=jnp.float32)


def pallas_linear(x, w, b, relu=False):
    """o = (relu)(x @ w + b) — fused matmul on the MXU."""
    M, K = x.shape
    _, N = w.shape
    b2 = b.reshape(1, N)

    def kernel(x_ref, w_ref, b_ref, o_ref):
        acc = _mm(x_ref[...], w_ref[...]) + b_ref[...]
        if relu:
            acc = jnp.maximum(acc, 0.0)
        o_ref[...] = acc.astype(o_ref.dtype)

    return pl.pallas_call(
        kernel,
        grid=(1,),
        in_specs=[_full_spec((M, K)), _full_spec((K, N)), _full_spec((1, N))],
        out_specs=_full_spec((M, N)),
        out_shape=jax.ShapeDtypeStruct((M, N), jnp.float32),
        cost_estimate=pl.CostEstimate(flops=2 * M * K * N, transcendentals=0,
                                      bytes_accessed=4 * (M * K + K * N + M * N)),
    )(x, w, b2)


def pallas_linear2(x1, w1, x2, w2, b, relu=True):
    """o = (relu)([x1 | x2] @ [[w1],[w2]] + b) — one MXU pass over K = K1 + K2.

    The tiny concats happen in the wrapper so the kernel sees a single lane-dense
    matmul instead of two K=32 passes plus a VPU add."""
    return pallas_linear(jnp.concatenate([x1, x2], axis=-1),
                         jnp.concatenate([w1, w2], axis=0), b, relu=relu)


def pallas_actor_conv_pool(cols2d, w, b, n_veh, t_obs):
    """Fused ActorNet: conv-as-matmul + bias + ReLU + temporal max-pool.

    (N*T, K) -> (N, C); the (N*T, C) activation stays in VMEM (never hits HBM)."""
    M, K = cols2d.shape
    C = w.shape[1]

    def kernel(x_ref, w_ref, b_ref, o_ref):
        h = jnp.maximum(_mm(x_ref[...], w_ref[...]) + b_ref[...], 0.0)   # (N*T, C)
        rows = [jnp.max(h[i * t_obs:(i + 1) * t_obs, :], axis=0, keepdims=True)
                for i in range(n_veh)]
        o_ref[...] = jnp.concatenate(rows, axis=0)

    return pl.pallas_call(
        kernel, grid=(1,),
        in_specs=[_full_spec((M, K)), _full_spec((K, C)), _full_spec((1, C))],
        out_specs=_full_spec((n_veh, C)),
        out_shape=jax.ShapeDtypeStruct((n_veh, C), jnp.float32),
    )(cols2d, w, b.reshape(1, C))


def pallas_mlp2(x, w1, b1, w2, b2):
    """o = relu(x @ w1 + b1) @ w2 + b2 — fused two-layer head, hidden stays in VMEM."""
    M, K = x.shape
    H = w1.shape[1]
    N = w2.shape[1]

    def kernel(x_ref, w1_ref, b1_ref, w2_ref, b2_ref, o_ref):
        h = jnp.maximum(_mm(x_ref[...], w1_ref[...]) + b1_ref[...], 0.0)
        o_ref[...] = (_mm(h, w2_ref[...]) + b2_ref[...]).astype(o_ref.dtype)

    return pl.pallas_call(
        kernel, grid=(1,),
        in_specs=[_full_spec((M, K)), _full_spec((K, H)), _full_spec((1, H)),
                  _full_spec((H, N)), _full_spec((1, N))],
        out_specs=_full_spec((M, N)),
        out_shape=jax.ShapeDtypeStruct((M, N), jnp.float32),
    )(x, w1, b1.reshape(1, H), w2, b2.reshape(1, N))


def pallas_target_offsets(gt_targets, cand, nc_pad):
    """argmin_k ||gt - cand_k||^2 (first-min-index tie-break) and gt - cand[argmin].

    Candidates are padded to a lane-aligned width with far-away sentinels so the
    lane reductions run unmasked; the unused (N, NC, 2) offsets tensor of the
    reference is never materialized or written back."""
    N = gt_targets.shape[0]
    NC = cand.shape[0]
    cand_p = jnp.concatenate(
        [cand, jnp.full((nc_pad - NC, 2), 1e4, jnp.float32)], axis=0)

    def kernel(g_ref, c_ref, idx_ref, goff_ref):
        g = g_ref[...]                          # (N, 2)
        c = c_ref[...]                          # (NCP, 2)
        off = g[:, None, :] - c[None, :, :]     # (N, NCP, 2) -- VMEM only
        d = jnp.sum(off * off, axis=-1)         # (N, NCP)
        dmin = jnp.min(d, axis=-1, keepdims=True)
        iota = lax.broadcasted_iota(jnp.int32, d.shape, 1)
        idx = jnp.min(jnp.where(d <= dmin, iota, jnp.int32(nc_pad)),
                      axis=-1, keepdims=True)
        onehot = (iota == idx).astype(jnp.float32)
        # gather the minimizing candidate via one-hot matmul (f32 on purpose)
        goff = g - jnp.dot(onehot, c, preferred_element_type=jnp.float32)
        idx_ref[...] = idx
        goff_ref[...] = goff

    return pl.pallas_call(
        kernel, grid=(1,),
        in_specs=[_full_spec((N, 2)), _full_spec((nc_pad, 2))],
        out_specs=(_full_spec((N, 1)), _full_spec((N, 2))),
        out_shape=(jax.ShapeDtypeStruct((N, 1), jnp.int32),
                   jax.ShapeDtypeStruct((N, 2), jnp.float32)),
    )(gt_targets, cand_p)


def pallas_decoder(dec_in, cand_p, ctx_w, ctx_b, tw1, tb1, tw2, tb2,
                   cand_w, ctxrep_w, joint_b, head_w, head_b):
    """Fused TargetsPredAttNet stand-in (single launch, all intermediates in VMEM):

        ctx  = relu([actors | path_feat | pose] @ ctx_w + ctx_b)
        traj = relu(ctx @ tw1 + tb1) @ tw2 + tb2
        head[n*NCP+c] = relu(cand[c]@cand_w + joint_b + ctx[n]@ctxrep_w) @ head_w + head_b

    The ctx / cand projections are hoisted (each computed once) and broadcast-added,
    replacing the (N*NC, H) ctx repeat and its matmul."""
    N, KX = dec_in.shape
    NCP = cand_p.shape[0]
    H = ctx_w.shape[1]
    P2 = tw2.shape[1]
    HO = head_w.shape[1]

    def kernel(x_ref, c_ref, cw_ref, cb_ref, t1_ref, tb1_ref, t2_ref, tb2_ref,
               aw_ref, rw_ref, jb_ref, hw_ref, hb_ref, traj_ref, head_ref):
        ctx = jnp.maximum(_mm(x_ref[...], cw_ref[...]) + cb_ref[...], 0.0)        # (N, H)
        th = jnp.maximum(_mm(ctx, t1_ref[...]) + tb1_ref[...], 0.0)               # (N, H)
        traj_ref[...] = (_mm(th, t2_ref[...]) + tb2_ref[...]).astype(traj_ref.dtype)
        ctx_proj = _mm(ctx, rw_ref[...])                                          # (N, H)
        cand_proj = _mm(c_ref[...], aw_ref[...]) + jb_ref[...]                    # (NCP, H)
        hw = hw_ref[...]
        hb = hb_ref[...]
        for n in range(N):                                   # static unroll, N is tiny
            joint_n = jnp.maximum(cand_proj + ctx_proj[n:n + 1, :], 0.0)          # (NCP, H)
            head_n = _mm(joint_n, hw) + hb                                        # (NCP, HO)
            head_ref[pl.ds(n * NCP, NCP), :] = head_n

    return pl.pallas_call(
        kernel, grid=(1,),
        in_specs=[_full_spec((N, KX)), _full_spec((NCP, 2)),
                  _full_spec((KX, H)), _full_spec((1, H)),
                  _full_spec((H, H)), _full_spec((1, H)),
                  _full_spec((H, P2)), _full_spec((1, P2)),
                  _full_spec((2, H)), _full_spec((H, H)), _full_spec((1, H)),
                  _full_spec((H, HO)), _full_spec((1, HO))],
        out_specs=(_full_spec((N, P2)), _full_spec((N * NCP, HO))),
        out_shape=(jax.ShapeDtypeStruct((N, P2), jnp.float32),
                   jax.ShapeDtypeStruct((N * NCP, HO), jnp.float32)),
    )(dec_in, cand_p, ctx_w, ctx_b.reshape(1, H), tw1, tb1.reshape(1, H),
      tw2, tb2.reshape(1, P2), cand_w, ctxrep_w, joint_b.reshape(1, H),
      head_w, head_b.reshape(1, HO))


def pallas_losses(pred1, gt1, w1, pred2, gt2, w2):
    """Both masked-mean SmoothL1 (beta=1) losses in one kernel / one launch (f32 VPU)."""
    R1, C1 = pred1.shape
    R2, C2 = pred2.shape

    def masked_sl1(p, g, w, cols):
        d = p - g
        ad = jnp.abs(d)
        l = jnp.where(ad < 1.0, 0.5 * d * d, ad - 0.5) * w
        s = jnp.sum(l, keepdims=True)
        c = jnp.sum(w, keepdims=True) * float(cols)
        return s / jnp.maximum(c, 1.0)

    def kernel(p1_ref, g1_ref, m1_ref, p2_ref, g2_ref, m2_ref, l1_ref, l2_ref):
        l1_ref[...] = masked_sl1(p1_ref[...], g1_ref[...], m1_ref[...], C1)
        l2_ref[...] = masked_sl1(p2_ref[...], g2_ref[...], m2_ref[...], C2)

    l1, l2 = pl.pallas_call(
        kernel, grid=(1,),
        in_specs=[_full_spec((R1, C1)), _full_spec((R1, C1)), _full_spec((R1, 1)),
                  _full_spec((R2, C2)), _full_spec((R2, C2)), _full_spec((R2, 1))],
        out_specs=(_full_spec((1, 1)), _full_spec((1, 1))),
        out_shape=(jax.ShapeDtypeStruct((1, 1), jnp.float32),
                   jax.ShapeDtypeStruct((1, 1), jnp.float32)),
    )(pred1, gt1, w1, pred2, gt2, w2)
    return l1[0, 0], l2[0, 0]


# ----------------------------------------------------------------------------- #
# JAX glue: segment (scatter) helpers
# ----------------------------------------------------------------------------- #
# TODO(synk): scatter_max / scatter_softmax / scatter_add are ragged scatters with
# no clean static-shape Pallas mapping at these sizes; kept as jax.ops.segment_*.
def segment_mean(x, ids, num):
    s = jax.ops.segment_sum(x, ids, num_segments=num)
    c = jax.ops.segment_sum(jnp.ones((x.shape[0], 1), jnp.float32), ids, num_segments=num)
    return s / jnp.maximum(c, 1.0)


def segment_softmax(logits, ids, num):
    m = jax.ops.segment_max(logits, ids, num_segments=num)
    e = jnp.exp(logits - m[ids])
    s = jax.ops.segment_sum(e, ids, num_segments=num)
    return e / jnp.maximum(s[ids], 1e-12)


# ----------------------------------------------------------------------------- #
# Synthetic graph / batch / params
# ----------------------------------------------------------------------------- #
def build_graph():
    # 2 graphs, 2 vehicles each, 8 nodes each, 4 paths each (2 candidate paths/veh).
    B, vehs_per, nodes_per, paths_per = 2, 2, 8, 4
    num_vehs, num_nodes, num_paths = B * vehs_per, B * nodes_per, B * paths_per
    local_paths = [np.arange(0, 4), np.arange(2, 6), np.arange(4, 8), np.arange(3, 7)]
    pn_u, pn_v, pnn = [], [], []
    for g in range(B):
        for p in range(paths_per):
            gp = g * paths_per + p
            nodes = local_paths[p] + g * nodes_per
            pn_u.append(np.full(nodes.shape[0], gp, dtype=np.int64))
            pn_v.append(nodes.astype(np.int64))
            pnn.append(np.array([[0, 1, 2], [1, 2, 3]], dtype=np.int64))
    pre_u, pre_v, suc_u, suc_v = [], [], [], []
    for g in range(B):
        loc = np.arange(nodes_per, dtype=np.int64) + g * nodes_per
        suc_u.append(loc[:-1]); suc_v.append(loc[1:])
        pre_u.append(loc[1:]); pre_v.append(loc[:-1])
    return dict(
        num_vehs=num_vehs, num_nodes=num_nodes, num_paths=num_paths,
        pn_u=np.concatenate(pn_u), pn_v=np.concatenate(pn_v), pnn=pnn,
        vp_u=np.repeat(np.arange(num_vehs, dtype=np.int64), 2),
        vp_v=np.arange(num_paths, dtype=np.int64),
        pre_u=np.concatenate(pre_u), pre_v=np.concatenate(pre_v),
        suc_u=np.concatenate(suc_u), suc_v=np.concatenate(suc_v),
        node_batch=np.repeat(np.arange(B), nodes_per),
        actor_batch=np.repeat(np.arange(B), vehs_per),
        path_num_nodes=np.full(num_paths, 4, dtype=np.int64),
        veh_full_path=np.array([1, 0, 1, 0] * B, dtype=np.int64),
    )


def build_batch(key, graph, cfg):
    T, Tp, N = cfg["obs_len"], cfg["num_preds"], graph["num_vehs"]
    ks = jax.random.split(key, 8)
    return dict(
        obs_traj_rel=jax.random.normal(ks[0], (T, N, 2), jnp.float32),
        obs_info=jax.random.normal(ks[1], (T, N, 2), jnp.float32),
        fut_traj_fre=jax.random.normal(ks[2], (Tp, N, 4), jnp.float32),
        fut_target=jax.random.normal(ks[3], (N, 4), jnp.float32) * 5.0,
        has_preds=jnp.ones((Tp, N), dtype=bool),
        graph_ctrs=jax.random.normal(ks[4], (graph["num_nodes"], 2), jnp.float32),
        graph_feats=jax.random.normal(ks[5], (graph["num_nodes"], 2), jnp.float32),
        graph_pris=jax.random.normal(ks[6], (graph["num_nodes"], 1), jnp.float32),
        graph_start=jax.random.normal(ks[7], (graph["num_paths"], 3), jnp.float32),
    )


def init_params(key, cfg):
    n_actor, n_map, H = cfg["n_actor"], cfg["n_map"], cfg["n_hidden"]
    num_preds, c_in = cfg["num_preds"], cfg["c_in"]
    shapes = dict(
        actor_w=(3 * c_in, n_actor), actor_b=(n_actor,),
        map_w=(5, n_map), map_b=(n_map,),
        a2m_wn=(n_map, n_map), a2m_wa=(n_actor, n_map), a2m_b=(n_map,),
        m2m_ws=(n_map, n_map), m2m_wm=(n_map, n_map), m2m_b=(n_map,),
        m2a_w1=(n_actor, n_actor), m2a_w2=(n_map, n_actor), m2a_b=(n_actor,),
        a2a_w1=(n_actor, n_actor), a2a_w2=(n_actor, n_actor), a2a_b=(n_actor,),
        path_w1=(n_map + n_actor, n_map), path_b1=(n_map,),
        path_w2=(n_map, 1), path_b2=(1,),
        ctx_w1=(n_actor + n_map, H), ctx_w2=(3, H), ctx_b=(H,),
        traj_w1=(H, H), traj_b1=(H,),
        traj_w2=(H, num_preds * 2), traj_b2=(num_preds * 2,),
        cand_w=(2, H), ctxrep_w=(H, H), joint_b=(H,),
        head_w=(H, 3), head_b=(3,),
    )
    keys = jax.random.split(key, len(shapes))
    return {name: 0.1 * jax.random.normal(k, shp, jnp.float32)
            for (name, shp), k in zip(shapes.items(), keys)}


# ----------------------------------------------------------------------------- #
# Forward pass (num_mods == 1 branch)
# ----------------------------------------------------------------------------- #
def forward(params, batch, graph, cfg):
    # TODO(synk): ActorNet/MapNet/A2M/M2M/M2A/A2A/PathPredNet/TargetsPredAttNet/
    # GraphCrossEntropyLoss class definitions are not in the provided source;
    # deterministic simplified stand-ins are used, with their matmul hot paths in Pallas.
    n_actor, n_map, H = cfg["n_actor"], cfg["n_map"], cfg["n_hidden"]
    num_preds, c_in = cfg["num_preds"], cfg["c_in"]
    NC, NCP = cfg["num_cands"], cfg["num_cands_pad"]
    N, T = graph["num_vehs"], cfg["obs_len"]

    # ---- ActorNet: conv1d (k=3, pad=1) as im2col matmul, fused ReLU + temporal max ----
    actors_nct = jnp.transpose(
        jnp.concatenate([batch["obs_traj_rel"], batch["obs_info"]], axis=-1), (1, 2, 0))
    x_ntc = jnp.transpose(actors_nct, (0, 2, 1))
    pad = jnp.pad(x_ntc, ((0, 0), (1, 1), (0, 0)))
    cols = jnp.concatenate([pad[:, k:k + T, :] for k in range(3)], axis=-1)  # (N,T,3*Cin)
    actors_x = pallas_actor_conv_pool(cols.reshape(N * T, 3 * c_in),
                                      params["actor_w"], params["actor_b"], N, T)  # (N, n_actor)

    # ---- MapNet ----
    node_in = jnp.concatenate([batch["graph_ctrs"], batch["graph_feats"], batch["graph_pris"]], axis=-1)
    nodes = pallas_linear(node_in, params["map_w"], params["map_b"], relu=True)  # (num_nodes, n_map)
    lane_ctrs = batch["graph_ctrs"]

    node_batch = jnp.asarray(graph["node_batch"])
    actor_batch = jnp.asarray(graph["actor_batch"])
    B = int(graph["node_batch"].max()) + 1

    # ---- A2M / M2M / M2A / A2A (single-dot fused matmuls, scatter aggregation in glue) ----
    actor_mean = segment_mean(actors_x, actor_batch, B)
    nodes = pallas_linear2(nodes, params["a2m_wn"], actor_mean[node_batch], params["a2m_wa"], params["a2m_b"])

    pre_u, pre_v = jnp.asarray(graph["pre_u"]), jnp.asarray(graph["pre_v"])
    suc_u, suc_v = jnp.asarray(graph["suc_u"]), jnp.asarray(graph["suc_v"])
    msg = (jax.ops.segment_sum(nodes[pre_v], pre_u, num_segments=graph["num_nodes"])
           + jax.ops.segment_sum(nodes[suc_v], suc_u, num_segments=graph["num_nodes"]))
    nodes = pallas_linear2(nodes, params["m2m_ws"], msg, params["m2m_wm"], params["m2m_b"])

    node_mean = segment_mean(nodes, node_batch, B)
    actors_x = pallas_linear2(actors_x, params["m2a_w1"], node_mean[actor_batch], params["m2a_w2"], params["m2a_b"])
    actor_mean = segment_mean(actors_x, actor_batch, B)
    actors_x = pallas_linear2(actors_x, params["a2a_w1"], actor_mean[actor_batch], params["a2a_w2"], params["a2a_b"])

    # ---- targets / candidate grid ----
    gt_preds = jnp.transpose(batch["fut_traj_fre"][:, :, :2], (1, 0, 2))      # (N, num_preds, 2)
    gt_targets = jnp.stack([batch["fut_target"][:, 0], batch["fut_target"][:, 2]], axis=-1)
    S = jnp.arange(0, 60, 3.0)
    D = jnp.arange(-3, 4, 3.0)
    cand = jnp.stack([jnp.tile(S[None, :], (3, 1)), jnp.tile(D[:, None], (1, 20))], axis=-1).reshape(NC, 2)
    gt_idx2, gt_target_offsets = pallas_target_offsets(gt_targets, cand, NCP)
    gt_target_idcs = gt_idx2[:, 0]
    row_idcs = jnp.arange(N)

    # ---- has_preds mask ----
    has_preds = jnp.transpose(batch["has_preds"], (1, 0))
    last = has_preds.astype(jnp.float32) + 0.1 * jnp.arange(num_preds, dtype=jnp.float32) / float(num_preds)
    mask = jnp.max(last, axis=1) > 1.0
    mask_f = mask.astype(jnp.float32)

    # ---- PathPredNet + path loss (num_mods == 1, non-ground_truth branch) ----
    pn_u_j, pn_v_j = jnp.asarray(graph["pn_u"]), jnp.asarray(graph["pn_v"])
    vp_u_j, vp_v_j = jnp.asarray(graph["vp_u"]), jnp.asarray(graph["vp_v"])
    paths = jax.ops.segment_max(nodes[pn_v_j], pn_u_j, num_segments=graph["num_paths"])
    path_in = jnp.concatenate([paths[vp_v_j], actors_x[vp_u_j]], axis=-1)
    path_logits = pallas_mlp2(path_in, params["path_w1"], params["path_b1"],
                              params["path_w2"], params["path_b2"])            # (P, 1)
    logit_flat = path_logits[:, 0]
    path_probs = segment_softmax(logit_flat, vp_u_j, graph["num_vehs"])

    vfp = jnp.asarray(graph["veh_full_path"]).astype(jnp.float32)
    # TODO(synk): GraphCrossEntropyLoss source unavailable; stand-in = per-vehicle NLL of gt path.
    per_veh_nll = jax.ops.segment_sum(-vfp * jnp.log(path_probs + 1e-12), vp_u_j,
                                      num_segments=graph["num_vehs"])
    path_loss = jnp.sum(per_veh_nll * mask_f) / jnp.maximum(jnp.sum(mask_f), 1.0)

    seg_max = jax.ops.segment_max(logit_flat, vp_u_j, num_segments=graph["num_vehs"])
    is_max = logit_flat >= seg_max[vp_u_j]
    cand_idx = jnp.where(is_max, jnp.arange(logit_flat.shape[0]), logit_flat.shape[0])
    veh_path_idcs_pred = jax.ops.segment_min(cand_idx, vp_u_j, num_segments=graph["num_vehs"])[:, None]

    # ---- ground-truth path selection + select_paths (host-side index bookkeeping) ----
    # TODO(synk): graph_gather / select_paths are dynamic-shape host-side index plumbing; kept as numpy glue.
    vpi_gt = np.arange(graph["num_paths"])[graph["veh_full_path"] == 1][:, None]   # (N, 1)
    curves = [lane_ctrs[graph["pn_v"][graph["pn_u"] == int(p)]] for p in vpi_gt[:, 0]]

    wi, hi, pe_lens = [], [], []
    for i in range(vpi_gt.shape[0]):
        pidx = int(vpi_gt[i, 0])
        w = graph["pn_v"][graph["pn_u"] == pidx]
        wi.append(w); hi.append(np.full(w.shape[0], i)); pe_lens.append(w.shape[0])
    wi = np.concatenate(wi)
    hi = np.concatenate(hi)

    div_term = jnp.exp(jnp.arange(0, n_map, 2, dtype=jnp.float32) * (-math.log(10000.0) / n_map))
    position = jnp.arange(cfg["pe_len"], dtype=jnp.float32)[:, None]
    pe = jnp.zeros((cfg["pe_len"], n_map), jnp.float32)
    pe = pe.at[:, 0::2].set(jnp.sin(position * div_term))
    pe = pe.at[:, 1::2].set(jnp.cos(position * div_term))
    PE = jnp.concatenate([pe[:l] for l in pe_lens], axis=0)

    path_nodes = nodes[jnp.asarray(wi)] + PE                         # (sum path nodes, n_map)
    initial_poses = batch["graph_start"][jnp.asarray(vpi_gt[:, 0])]  # (N, 3)

    # ---- TargetsPredAttNet stand-in: one fused decoder kernel (ctx + traj + cand head) ----
    path_feat = segment_mean(path_nodes, jnp.asarray(hi), N)
    dec_in = jnp.concatenate([actors_x, path_feat, initial_poses], axis=-1)          # (N, 67)
    ctx_w_cat = jnp.concatenate([params["ctx_w1"], params["ctx_w2"]], axis=0)        # (67, H)
    cand_p = jnp.concatenate([cand, jnp.zeros((NCP - NC, 2), jnp.float32)], axis=0)  # (64, 2)
    traj_flat, head_flat = pallas_decoder(
        dec_in, cand_p, ctx_w_cat, params["ctx_b"],
        params["traj_w1"], params["traj_b1"], params["traj_w2"], params["traj_b2"],
        params["cand_w"], params["ctxrep_w"], params["joint_b"],
        params["head_w"], params["head_b"])
    traj_pred = traj_flat.reshape(N, num_preds, 2)
    head = head_flat.reshape(N, NCP, 3)
    target_logits = head[:, :NC, 0]                                   # (N, NC)
    target_offset = head[:, :NC, 1:3]                                 # (N, NC, 2)
    best = jnp.argmax(target_logits, axis=-1)
    target_pred = cand[best] + target_offset[row_idcs, best]

    # ---- Losses (both masked SmoothL1 reductions fused in one kernel) ----
    w_traj = (mask[:, None] & has_preds).astype(jnp.float32).reshape(N * num_preds, 1)
    off_pred = target_offset[row_idcs, gt_target_idcs]
    traj_loss, target_offset_loss = pallas_losses(
        traj_pred.reshape(N * num_preds, 2), gt_preds.reshape(N * num_preds, 2), w_traj,
        off_pred, gt_target_offsets, mask_f[:, None])

    logp = jax.nn.log_softmax(target_logits, axis=-1)
    ce = -jnp.take_along_axis(logp, gt_target_idcs[:, None], axis=1)[:, 0]
    target_cls_loss = jnp.sum(ce * mask_f) / jnp.maximum(jnp.sum(mask_f), 1.0)

    loss = traj_loss + 0.5 * path_loss + 0.1 * (target_cls_loss + target_offset_loss)

    path_idx = graph["vp_v"][graph["veh_full_path"] == 1]
    curves_gt = [lane_ctrs[graph["pn_v"][graph["pn_u"] == int(p)]] for p in path_idx]

    return {
        "frenet_pred": jnp.transpose(traj_pred, (1, 0, 2)),
        "curves": curves, "curves_gt": curves_gt,
        "converted_gt": batch["fut_traj_fre"][:, :, 2:],
        "loss": loss, "tloss": traj_loss, "ploss": path_loss,
        "target": target_pred, "tar_cls_loss": target_cls_loss,
        "tar_offset_loss": target_offset_loss,
        "path": veh_path_idcs_pred, "gt_path": jnp.asarray(vpi_gt),
    }


if __name__ == "__main__":
    key = jax.random.PRNGKey(0)
    kp, kb = jax.random.split(key)
    graph = build_graph()
    params = init_params(kp, CFG)
    batch = build_batch(kb, graph, CFG)
    ret = forward(params, batch, graph, CFG)
    jax.block_until_ready((ret["loss"], ret["frenet_pred"], ret["target"]))
    print("KERNEL_OK")
</pallas_src>

<mosaic_0001>
module attributes {stable_mosaic.version = 11 : i64} {
  func.func @kernel(%arg0: i32, %arg1: memref<32x12xf32, #tpu.memory_space<vmem>>, %arg2: memref<12x32xf32, #tpu.memory_space<vmem>>, %arg3: memref<1x32xf32, #tpu.memory_space<vmem>>, %arg4: memref<4x32xf32, #tpu.memory_space<vmem>>) attributes {dimension_semantics = [#tpu.dimension_semantics<arbitrary>], iteration_bounds = array<i64: 1>, scalar_prefetch = 0 : i64, scratch_operands = 0 : i64, tpu.core_type = #tpu.core_type<tc>, window_params = [{pipeline_mode = #tpu.pipeline_mode<synchronous>, transform_indices = @transform_0, window_bounds = array<i64: 32, 12>}, {pipeline_mode = #tpu.pipeline_mode<synchronous>, transform_indices = @transform_1, window_bounds = array<i64: 12, 32>}, {pipeline_mode = #tpu.pipeline_mode<synchronous>, transform_indices = @transform_2, window_bounds = array<i64: 1, 32>}, {pipeline_mode = #tpu.pipeline_mode<synchronous>, transform_indices = @transform_3, window_bounds = array<i64: 4, 32>}]} {
    %c0 = arith.constant 0 : index
    %c0_0 = arith.constant 0 : index
    %0 = vector.load %arg1[%c0, %c0_0] : memref<32x12xf32, #tpu.memory_space<vmem>>, vector<32x12xf32>
    %c0_1 = arith.constant 0 : index
    %c0_2 = arith.constant 0 : index
    %1 = vector.load %arg2[%c0_1, %c0_2] : memref<12x32xf32, #tpu.memory_space<vmem>>, vector<12x32xf32>
    %2 = arith.truncf %0 : vector<32x12xf32> to vector<32x12xbf16>
    %3 = arith.truncf %1 : vector<12x32xf32> to vector<12x32xbf16>
    %cst = arith.constant dense<0.000000e+00> : vector<32x32xf32>
    %4 = tpu.matmul %2, %3, %cst {dimension_numbers = #tpu.dot_dimension_numbers<[1], [0], [0], [1], [0, 0, 1, 1], [], []>} : vector<32x12xbf16>, vector<12x32xbf16>, vector<32x32xf32> -> vector<32x32xf32>
    %c0_3 = arith.constant 0 : index
    %c0_4 = arith.constant 0 : index
    %5 = vector.load %arg3[%c0_3, %c0_4] : memref<1x32xf32, #tpu.memory_space<vmem>>, vector<1x32xf32>
    %6 = vector.broadcast %5 : vector<1x32xf32> to vector<32x32xf32>
    %7 = arith.addf %4, %6 : vector<32x32xf32>
    %cst_5 = arith.constant 0.000000e+00 : f32
    %8 = vector.broadcast %cst_5 : f32 to vector<32x32xf32>
    %9 = arith.maximumf %7, %8 : vector<32x32xf32>
    %10 = vector.extract_strided_slice %9 {offsets = [0, 0], sizes = [8, 32], strides = [1, 1]} : vector<32x32xf32> to vector<8x32xf32>
    %cst_6 = arith.constant dense<0xFF800000> : vector<32xf32>
    %11 = vector.multi_reduction <maximumf>, %10, %cst_6 [0] : vector<8x32xf32> to vector<32xf32>
    %12 = vector.shape_cast %11 : vector<32xf32> to vector<1x32xf32>
    %13 = vector.extract_strided_slice %9 {offsets = [8, 0], sizes = [8, 32], strides = [1, 1]} : vector<32x32xf32> to vector<8x32xf32>
    %cst_7 = arith.constant dense<0xFF800000> : vector<32xf32>
    %14 = vector.multi_reduction <maximumf>, %13, %cst_7 [0] : vector<8x32xf32> to vector<32xf32>
    %15 = vector.shape_cast %14 : vector<32xf32> to vector<1x32xf32>
    %16 = vector.extract_strided_slice %9 {offsets = [16, 0], sizes = [8, 32], strides = [1, 1]} : vector<32x32xf32> to vector<8x32xf32>
    %cst_8 = arith.constant dense<0xFF800000> : vector<32xf32>
    %17 = vector.multi_reduction <maximumf>, %16, %cst_8 [0] : vector<8x32xf32> to vector<32xf32>
    %18 = vector.shape_cast %17 : vector<32xf32> to vector<1x32xf32>
    %19 = vector.extract_strided_slice %9 {offsets = [24, 0], sizes = [8, 32], strides = [1, 1]} : vector<32x32xf32> to vector<8x32xf32>
    %cst_9 = arith.constant dense<0xFF800000> : vector<32xf32>
    %20 = vector.multi_reduction <maximumf>, %19, %cst_9 [0] : vector<8x32xf32> to vector<32xf32>
    %21 = vector.shape_cast %20 : vector<32xf32> to vector<1x32xf32>
    %22 = tpu.concatenate %12, %15, %18, %21 in 0 : vector<1x32xf32>, vector<1x32xf32>, vector<1x32xf32>, vector<1x32xf32> -> vector<4x32xf32>
    %c0_10 = arith.constant 0 : index
    %c0_11 = arith.constant 0 : index
    %23 = vector.load %arg4[%c0_10, %c0_11] : memref<4x32xf32, #tpu.memory_space<vmem>>, vector<4x32xf32>
    tpu.vector_store %arg4[%c0_10, %c0_11], %22 {strides = array<i32>} : memref<4x32xf32, #tpu.memory_space<vmem>>, vector<4x32xf32>,
    return
  }
  func.func @transform_0(%arg0: i32) -> (i32, i32) {
    %c0_i32 = arith.constant 0 : i32
    %c0_i32_0 = arith.constant 0 : i32
    %c0_i32_1 = arith.constant 0 : i32
    return %c0_i32, %c0_i32_0 : i32, i32
  }
  func.func @transform_1(%arg0: i32) -> (i32, i32) {
    %c0_i32 = arith.constant 0 : i32
    %c0_i32_0 = arith.constant 0 : i32
    %c0_i32_1 = arith.constant 0 : i32
    return %c0_i32, %c0_i32_0 : i32, i32
  }
  func.func @transform_2(%arg0: i32) -> (i32, i32) {
    %c0_i32 = arith.constant 0 : i32
    %c0_i32_0 = arith.constant 0 : i32
    %c0_i32_1 = arith.constant 0 : i32
    return %c0_i32, %c0_i32_0 : i32, i32
  }
  func.func @transform_3(%arg0: i32) -> (i32, i32) {
    %c0_i32 = arith.constant 0 : i32
    %c0_i32_0 = arith.constant 0 : i32
    %c0_i32_1 = arith.constant 0 : i32
    return %c0_i32, %c0_i32_0 : i32, i32
  }
}

</mosaic_0001>

<llo_original>
// kernel: tpu_custom_call.1
$region0: #{tpu_custom_call.1}
  #allocation0 [shape = 'u32[]', space=smem, size = 0x4, offset = 0x4, fixed_abs, tag = 'smem constant byte address 0x4 - core index']
  #allocation1 [shape = 'u32[144,128]{1,0:T(1,128)}', space=vmem, size = 0x12000, scoped, tag = 'internal scratch']
  %s0 = inlined_call_operand.vmem [shape: f32[32,12], index: 0, kind: input, shape index: {}]
  %s1 = inlined_call_operand.vmem [shape: f32[12,32], index: 1, kind: input, shape index: {}]
  %s2 = inlined_call_operand.vmem [shape: f32[1,32], index: 2, kind: input, shape index: {}]
  %s3 = inlined_call_operand.hbm [shape: f32[4,32], index: 3, kind: output, shape index: {}]
  %s4 = sld [smem:[#allocation0]]
  $region22: #{tpu_custom_call.1} parent=0
    _
  %s6 = ssub.s32 1, %s4
  %s7 = scalar_select 0, %s6, %s4
  $region1: #{tpu_custom_call.1} parent=0
    #allocation2 [shape = 'u8[2048]{0}', space=vmem, size = 0x800, scoped, tag = 'output window, operand 0, single buffered']
    #allocation3 [shape = 's32[1]{0}', space=sflag, size = 0x4, scoped, tag = 'scoped memory for tpu_custom_call.1']
    %8 = vsyncpa [#allocation3], 0
    // Predicated region
    $region2: #{tpu_custom_call.1} parent=1 // pred_check
      _
    $region3: #{tpu_custom_call.1} parent=1 // pred_check_branch
      %10 = sbr.rel (0) target = $region5
    $region4: #{tpu_custom_call.1} parent=1 // pred_region
      _
    $region5: #{tpu_custom_call.1} parent=1 // pred_fallthru
      _
    // Predicated region
    $region6: #{tpu_custom_call.1} parent=1 // pred_check
      _
    $region7: #{tpu_custom_call.1} parent=1 // pred_check_branch
      %12 = sbr.rel (0) target = $region9
    $region8: #{tpu_custom_call.1} parent=1 // pred_region
      _
    $region9: #{tpu_custom_call.1} parent=1 // pred_fallthru
      _
    // Predicated region
    $region10: #{tpu_custom_call.1} parent=1 // pred_check
      _
    $region11: #{tpu_custom_call.1} parent=1 // pred_check_branch
      %14 = sbr.rel (0) target = $region13
    $region12: #{tpu_custom_call.1} parent=1 // pred_region
      _
    $region13: #{tpu_custom_call.1} parent=1 // pred_fallthru
      _
    %v16 = vld [vmem:[%s0] sm:$0xff]
    %v17 = vld [vmem:[%s0 + $0x8] sm:$0xff]
    %v18 = vld [vmem:[%s0 + $0x10] sm:$0xff]
    %v19 = vld [vmem:[%s0 + $0x18] sm:$0xff]
    %v20 = vld [vmem:[%s1] sm:$0xff]
    %v21 = vld [vmem:[%s1 + $0x8] sm:$0xf]
    %v22 = vpack.c.bf16 %v17, %v16
    %v23 = vpack.c.bf16 %v19, %v18
    %v24 = vpack.c.bf16 %v21, %v20
    %v25 = vld [vmem:[%s2] sm:$0x1]
    %v27 = vlaneseq
    %v28 = vshrl.u32 %v27, 7
    %v29 = vsub.s32 0, %v28
    %v30 = vrot.slane %v25, %v29
    %vm32 = vcmask 97280
    %v34 = vsel %vm32, %v22, 0
    %v37 = vsel %vm32, %v23, 0
    %vm39 = vcmask 1045504
    %v41 = vsel %vm39, %v24, 0
    %43 = vmatprep.subr.bf16.mxu0 0
    %44 = vmatpush1.bf16.msra.mxu0 %v41
    %45 = vmatprep.subr.bf16.mxu0 0
    %46 = vmatpush1.bf16.msra.mxu0 0
    %47 = vmatprep.subr.bf16.mxu0 0
    %48 = vmatpush1.bf16.msra.mxu0 0
    %49 = vmatprep.subr.bf16.mxu0 0
    %50 = vmatpush1.bf16.msra.mxu0 0
    %51 = vmatprep.subr.bf16.mxu0 0
    %52 = vmatpush1.bf16.msra.mxu0 0
    %53 = vmatprep.subr.bf16.mxu0 0
    %54 = vmatpush1.bf16.msra.mxu0 0
    %55 = vmatprep.subr.bf16.mxu0 0
    %56 = vmatpush1.bf16.msra.mxu0 0
    %57 = vmatprep.subr.bf16.mxu0 0
    %58 = vmatpush1.bf16.msra.mxu0 0
    %59 = vmatprep.subr.bf16.mxu0 0
    %60 = vmatpush1.bf16.msra.mxu0 0
    %61 = vmatprep.subr.bf16.mxu0 0
    %62 = vmatpush1.bf16.msra.mxu0 0
    %63 = vmatprep.subr.bf16.mxu0 0
    %64 = vmatpush1.bf16.msra.mxu0 0
    %65 = vmatprep.subr.bf16.mxu0 0
    %66 = vmatpush1.bf16.msra.mxu0 0
    %67 = vmatprep.subr.bf16.mxu0 0
    %68 = vmatpush1.bf16.msra.mxu0 0
    %69 = vmatprep.subr.bf16.mxu0 0
    %70 = vmatpush1.bf16.msra.mxu0 0
    %71 = vmatprep.subr.bf16.mxu0 0
    %72 = vmatpush1.bf16.msra.mxu0 0
    %73 = vmatprep.subr.bf16.mxu0 0
    %74 = vmatpush1.bf16.msra.mxu0 0
    %75 = vmatprep.mubr.bf16.mxu0 0
    %76 = vmatmul.mubr.bf16.gmra.mrb[0].mxu0 %v34
    %v77 = vpop.f32.mrb[0].mxu0
    %v78 = vadd.f32 %v30, %v77
    %v79 = vpop.f32.mrb[0].mxu0
    %v80 = vpop.f32.mrb[0].mxu0
    %v81 = vadd.f32 %v30, %v80
    %v82 = vpop.f32.mrb[0].mxu0
    %83 = vmatprep.mubr.bf16.mxu0 0
    %84 = vmatmul.mubr.bf16.gmra.mrb[0].mxu0 %v37
    %v85 = vpop.f32.mrb[0].mxu0
    %v86 = vadd.f32 %v30, %v85
    %v87 = vpop.f32.mrb[0].mxu0
    %v88 = vpop.f32.mrb[0].mxu0
    %v89 = vadd.f32 %v30, %v88
    %v90 = vpop.f32.mrb[0].mxu0
    %91 = vdwg.mxu0
    %v92 = vmax.f32 %v78, 0.0
    %v93 = vmax.f32 %v81, 0.0
    %v94 = vmax.f32 %v86, 0.0
    %v95 = vmax.f32 %v89, 0.0
    %vm96 = vcmask 261120
    %v97 = vsel %vm96, %v92, -inf
    %v98 = vrot.slane %v97, 4
    %v99 = vmax.f32 %v97, %v98
    %v100 = vrot.slane %v99, 2
    %v101 = vmax.f32 %v99, %v100
    %v102 = vrot.slane %v101, 1
    %v103 = vmax.f32 %v101, %v102
    %v104 = vsel %vm96, %v93, -inf
    %v105 = vrot.slane %v104, 4
    %v106 = vmax.f32 %v104, %v105
    %v107 = vrot.slane %v106, 2
    %v108 = vmax.f32 %v106, %v107
    %v109 = vrot.slane %v108, 1
    %v110 = vmax.f32 %v108, %v109
    %v111 = vsel %vm96, %v94, -inf
    %v112 = vrot.slane %v111, 4
    %v113 = vmax.f32 %v111, %v112
    %v114 = vrot.slane %v113, 2
    %v115 = vmax.f32 %v113, %v114
    %v116 = vrot.slane %v115, 1
    %v117 = vmax.f32 %v115, %v116
    %v118 = vsel %vm96, %v95, -inf
    %v119 = vrot.slane %v118, 4
    %v120 = vmax.f32 %v118, %v119
    %v121 = vrot.slane %v120, 2
    %v122 = vmax.f32 %v120, %v121
    %v123 = vrot.slane %v122, 1
    %v124 = vmax.f32 %v122, %v123
    %vm125 = vcmask 1040384
    %v126 = vsel %vm125, %v103, %v110
    %vm127 = vcmask 1041408
    %v128 = vsel %vm127, %v126, %v117
    %vm129 = vcmask 1042432
    %v130 = vsel %vm129, %v128, %v124
    %vm131 = vcmask 257024
    %132 = vst.msk [vmem:[#allocation2] sm:$0xf] %vm131, %v130
    // Predicated region
    $region14: #{tpu_custom_call.1} parent=1 // pred_check
      _
    $region15: #{tpu_custom_call.1} parent=1 // pred_check_branch
      %134 = sbr.rel (0) target = $region17
    $region16: #{tpu_custom_call.1} parent=1 // pred_region
      %s136 = ssub.s32 64, 64
      %137 = vsyncadd [#allocation3], %s136
      %s139 = sshll.u32 [#allocation2], 4
      %s140 = int_to_ptr.vmem [resolvable:$true] %s139
      %142 = dma.vmem_to_hbm [thread:$0]  %s140, 64, %s3, [#allocation3]
    $region17: #{tpu_custom_call.1} parent=1 // pred_fallthru
      _
    // Predicated region
    $region18: #{tpu_custom_call.1} parent=1 // pred_check
      _
    $region19: #{tpu_custom_call.1} parent=1 // pred_check_branch
      %144 = sbr.rel (0) target = $region21
    $region20: #{tpu_custom_call.1} parent=1 // pred_region
      %145 = dma.done [#allocation3], 64
    $region21: #{tpu_custom_call.1} parent=1 // pred_fallthru
      _
    %146 = vsyncpa [#allocation3], 1

</llo_original>
